<compile_context>
chip_gen: v7x
topology: tpu7x:2x2x1
jax: 0.10.0
libtpu: 0.0.40
codegen_flags: <defaults>
</compile_context>

<pallas_src>
import functools

import jax
import jax.numpy as jnp
from jax.experimental import pallas as pl
from jax.experimental.pallas import tpu as pltpu


def _shortcut_kernel(x_ref, sel_ref, o_ref, *, nb, rows_in, rows_out, pad_rows):
    """One grid step handles `nb` images.

    x_ref  : (nb * rows_in,  p * H * W)    packed input rows (p channels / row)
    sel_ref: (p * H * W,     p * HWo)      0/1 (::2, ::2) selector, VMEM-resident
    o_ref  : (nb * rows_out, p * HWo)      packed output rows
    """
    lanes = o_ref.shape[-1]

    if pad_rows > 0:
        zpad1 = jnp.zeros((pad_rows, lanes), o_ref.dtype)
        zpad2 = jnp.zeros((2 * pad_rows, lanes), o_ref.dtype)
        # leading zero-pad band of the first image in this block
        o_ref[0:pad_rows, :] = zpad1

    for img in range(nb):                       # small static unroll
        in_lo = img * rows_in
        data_lo = img * rows_out + pad_rows
        # Exact 0/1 selection dot on the otherwise-idle MXU: every output
        # element is 1.0 * exactly one input element.
        y = jnp.dot(x_ref[in_lo:in_lo + rows_in, :], sel_ref[...],
                    preferred_element_type=jnp.float32)
        o_ref[data_lo:data_lo + rows_in, :] = y.astype(o_ref.dtype)
        if pad_rows > 0:
            # trailing pad band of this image merged with the leading pad band
            # of the next image (fewer, larger stores).
            if img == nb - 1:
                o_ref[data_lo + rows_in:data_lo + rows_in + pad_rows, :] = zpad1
            else:
                o_ref[data_lo + rows_in:
                      data_lo + rows_in + 2 * pad_rows, :] = zpad2


def lambda_layer_pad(x_nchw, planes, n_block=32):
    """Pallas TPU version of the ResNet_P option-A shortcut lambda (NCHW in/out).

    Equivalent to F.pad(x[:, :, ::2, ::2], (0,0,0,0,planes//4,planes//4), 0).
    """
    N, C, H, W = x_nchw.shape
    pad = planes // 4
    C_out = C + 2 * pad
    # TODO(synk): odd H/W (ceil semantics of ::2) would need a padded tail;
    # ResNet_P always calls this shortcut with even spatial dims.
    assert H % 2 == 0 and W % 2 == 0, "shortcut kernel assumes even H, W"
    H_out, W_out = H // 2, W // 2
    HW, HW_out = H * W, H_out * W_out
    dtype = x_nchw.dtype
    itemsize = jnp.dtype(dtype).itemsize

    # Channel-packing factor: pack p channels per row so the output lane dim
    # reaches >= 128 (unmasked full-lane stores, lane-dense VMEM blocks).
    p = 1
    while p * HW_out < 128 and C % (2 * p) == 0 and pad % (2 * p) == 0:
        p *= 2

    rows_in = C // p            # packed input rows per image
    rows_out = C_out // p       # packed output rows per image
    pad_rows = pad // p         # zero rows per pad band per image

    # 0/1 selector, built once in the wrapper (x.dtype) and passed as an input
    # with a constant index_map -> DMA'd once, stays VMEM-resident.
    # packed-out index (ci, h, w)  <-  packed-in index (ci, 2h, 2w).
    jo = jnp.arange(p * HW_out, dtype=jnp.int32)
    ci, rem = jo // HW_out, jo % HW_out
    src = ci * HW + 2 * (rem // W_out) * W + 2 * (rem % W_out)
    ki = jnp.arange(p * HW, dtype=jnp.int32)[:, None]
    sel = (ki == src[None, :]).astype(dtype)                # (p*HW, p*HW_out)

    # Images per grid step: largest divisor of N that keeps the blocks
    # sublane-aligned (x8) and comfortably inside even v5e's 16 MiB scoped VMEM
    # (double-buffered); prefer a grid >= 2 so the "parallel" axis can split
    # across v7x's two TensorCores.
    def _ok(nb):
        if nb < 1 or N % nb:
            return False
        if nb != N and ((nb * rows_in) % 8 or (nb * rows_out) % 8):
            return False
        blk = nb * (rows_in * p * HW + rows_out * p * HW_out) * itemsize
        return 2 * blk <= (12 << 20)

    nb = None
    for cap in (min(n_block, max(N // 2, 1)), min(n_block, N)):
        for cand in range(cap, 0, -1):
            if _ok(cand):
                nb = cand
                break
        if nb is not None:
            break
    if nb is None:
        nb = N                  # full-array block: always layout-legal

    # Free, row-major reshape (no data movement).
    x2 = x_nchw.reshape(N * rows_in, p * HW)

    kernel = functools.partial(_shortcut_kernel, nb=nb, rows_in=rows_in,
                               rows_out=rows_out, pad_rows=pad_rows)

    out2 = pl.pallas_call(
        kernel,
        out_shape=jax.ShapeDtypeStruct((N * rows_out, p * HW_out), dtype),
        grid=(N // nb,),
        in_specs=[
            pl.BlockSpec((nb * rows_in, p * HW), lambda i: (i, 0)),
            pl.BlockSpec((p * HW, p * HW_out), lambda i: (0, 0)),  # resident
        ],
        out_specs=pl.BlockSpec((nb * rows_out, p * HW_out), lambda i: (i, 0)),
        compiler_params=pltpu.CompilerParams(
            dimension_semantics=("parallel",)),   # shard image axis across TCs
    )(x2, sel)

    # Free reshape back to NCHW.
    return out2.reshape(N, C_out, H_out, W_out)


if __name__ == "__main__":
    key = jax.random.PRNGKey(0)
    N, C, H, W = 2, 4, 16, 16
    planes = 2 * C                  # option-A shortcut doubles the channel count
    x = jax.random.normal(key, (N, C, H, W), dtype=jnp.float32)

    out = jax.block_until_ready(lambda_layer_pad(x, planes))

    # pure-JAX reference of the PyTorch lambda:
    # F.pad(x[:, :, ::2, ::2], (0,0,0,0,planes//4,planes//4))
    pad = planes // 4
    ref = jnp.pad(x[:, :, ::2, ::2], ((0, 0), (pad, pad), (0, 0), (0, 0)))

    assert out.shape == ref.shape, (out.shape, ref.shape)
    assert out.dtype == ref.dtype, (out.dtype, ref.dtype)
    assert jnp.allclose(out, ref, atol=1e-6), float(jnp.max(jnp.abs(out - ref)))
    print("KERNEL_OK")
</pallas_src>

<mosaic_0001>
module attributes {stable_mosaic.version = 11 : i64} {
  func.func @_shortcut_kernel(%arg0: i32, %arg1: memref<4x512xf32, #tpu.memory_space<vmem>>, %arg2: memref<512x128xf32, #tpu.memory_space<vmem>>, %arg3: memref<8x128xf32, #tpu.memory_space<vmem>>) attributes {dimension_semantics = [#tpu.dimension_semantics<parallel>], iteration_bounds = array<i64: 1>, scalar_prefetch = 0 : i64, scratch_operands = 0 : i64, tpu.core_type = #tpu.core_type<tc>, window_params = [{transform_indices = @transform_0, window_bounds = array<i64: 4, 512>}, {pipeline_mode = #tpu.pipeline_mode<synchronous>, transform_indices = @transform_1, window_bounds = array<i64: 512, 128>}, {transform_indices = @transform_2, window_bounds = array<i64: 8, 128>}]} {
    %cst = arith.constant 0.000000e+00 : f32
    %0 = vector.broadcast %cst : f32 to vector<1x128xf32>
    %cst_0 = arith.constant 0.000000e+00 : f32
    %1 = vector.broadcast %cst_0 : f32 to vector<2x128xf32>
    %c0 = arith.constant 0 : index
    %c0_1 = arith.constant 0 : index
    %2 = vector.load %arg3[%c0, %c0_1] : memref<8x128xf32, #tpu.memory_space<vmem>>, vector<1x128xf32>
    tpu.vector_store %arg3[%c0, %c0_1], %0 {strides = array<i32>} : memref<8x128xf32, #tpu.memory_space<vmem>>, vector<1x128xf32>,
    %c0_2 = arith.constant 0 : index
    %c0_3 = arith.constant 0 : index
    %3 = vector.load %arg1[%c0_2, %c0_3] : memref<4x512xf32, #tpu.memory_space<vmem>>, vector<2x512xf32>
    %c0_4 = arith.constant 0 : index
    %c0_5 = arith.constant 0 : index
    %4 = vector.load %arg2[%c0_4, %c0_5] : memref<512x128xf32, #tpu.memory_space<vmem>>, vector<512x128xf32>
    %cst_6 = arith.constant dense<0.000000e+00> : vector<2x128xf32>
    %5 = tpu.matmul %3, %4, %cst_6 {dimension_numbers = #tpu.dot_dimension_numbers<[1], [0], [0], [1], [0, 0, 1, 1], [], []>} : vector<2x512xf32>, vector<512x128xf32>, vector<2x128xf32> -> vector<2x128xf32>
    %c1 = arith.constant 1 : index
    %c0_7 = arith.constant 0 : index
    %6 = vector.load %arg3[%c1, %c0_7] : memref<8x128xf32, #tpu.memory_space<vmem>>, vector<2x128xf32>
    tpu.vector_store %arg3[%c1, %c0_7], %5 {strides = array<i32>} : memref<8x128xf32, #tpu.memory_space<vmem>>, vector<2x128xf32>,
    %c3 = arith.constant 3 : index
    %c0_8 = arith.constant 0 : index
    %7 = vector.load %arg3[%c3, %c0_8] : memref<8x128xf32, #tpu.memory_space<vmem>>, vector<2x128xf32>
    tpu.vector_store %arg3[%c3, %c0_8], %1 {strides = array<i32>} : memref<8x128xf32, #tpu.memory_space<vmem>>, vector<2x128xf32>,
    %c2 = arith.constant 2 : index
    %c0_9 = arith.constant 0 : index
    %8 = vector.load %arg1[%c2, %c0_9] : memref<4x512xf32, #tpu.memory_space<vmem>>, vector<2x512xf32>
    %c0_10 = arith.constant 0 : index
    %c0_11 = arith.constant 0 : index
    %9 = vector.load %arg2[%c0_10, %c0_11] : memref<512x128xf32, #tpu.memory_space<vmem>>, vector<512x128xf32>
    %cst_12 = arith.constant dense<0.000000e+00> : vector<2x128xf32>
    %10 = tpu.matmul %8, %9, %cst_12 {dimension_numbers = #tpu.dot_dimension_numbers<[1], [0], [0], [1], [0, 0, 1, 1], [], []>} : vector<2x512xf32>, vector<512x128xf32>, vector<2x128xf32> -> vector<2x128xf32>
    %c5 = arith.constant 5 : index
    %c0_13 = arith.constant 0 : index
    %11 = vector.load %arg3[%c5, %c0_13] : memref<8x128xf32, #tpu.memory_space<vmem>>, vector<2x128xf32>
    tpu.vector_store %arg3[%c5, %c0_13], %10 {strides = array<i32>} : memref<8x128xf32, #tpu.memory_space<vmem>>, vector<2x128xf32>,
    %c7 = arith.constant 7 : index
    %c0_14 = arith.constant 0 : index
    %12 = vector.load %arg3[%c7, %c0_14] : memref<8x128xf32, #tpu.memory_space<vmem>>, vector<1x128xf32>
    tpu.vector_store %arg3[%c7, %c0_14], %0 {strides = array<i32>} : memref<8x128xf32, #tpu.memory_space<vmem>>, vector<1x128xf32>,
    return
  }
  func.func @transform_0(%arg0: i32) -> (i32, i32) {
    %c0_i32 = arith.constant 0 : i32
    %c0_i32_0 = arith.constant 0 : i32
    return %arg0, %c0_i32 : i32, i32
  }
  func.func @transform_1(%arg0: i32) -> (i32, i32) {
    %c0_i32 = arith.constant 0 : i32
    %c0_i32_0 = arith.constant 0 : i32
    %c0_i32_1 = arith.constant 0 : i32
    return %c0_i32, %c0_i32_0 : i32, i32
  }
  func.func @transform_2(%arg0: i32) -> (i32, i32) {
    %c0_i32 = arith.constant 0 : i32
    %c0_i32_0 = arith.constant 0 : i32
    return %arg0, %c0_i32 : i32, i32
  }
}

</mosaic_0001>

<llo_original>
// kernel: tpu_custom_call.1
$region0: #{tpu_custom_call.1}
  #allocation0 [shape = 'u32[]', space=smem, size = 0x4, offset = 0x4, fixed_abs, tag = 'smem constant byte address 0x4 - core index']
  #allocation1 [shape = 'u32[144,128]{1,0:T(1,128)}', space=vmem, size = 0x12000, scoped, tag = 'internal scratch']
  %s0 = inlined_call_operand.hbm [shape: f32[4,512], index: 0, kind: input, shape index: {}]
  %s1 = inlined_call_operand.hbm [shape: f32[512,128], index: 1, kind: input, shape index: {}]
  %s2 = inlined_call_operand.hbm [shape: f32[8,128], index: 2, kind: output, shape index: {}]
  %s3 = sld [smem:[#allocation0]]
  $region26: #{tpu_custom_call.1} parent=0
    _
  %s5 = ssub.s32 1, %s3
  %s6 = scalar_select 0, %s5, %s3
  $region1: #{tpu_custom_call.1} parent=0
    #allocation2 [shape = 'u8[8192]{0}', space=vmem, size = 0x2000, scoped, tag = 'input window, operand 0, single buffered']
    #allocation3 [shape = 's32[1]{0}', space=sflag, size = 0x4, scoped, tag = 'scoped memory for tpu_custom_call.1']
    #allocation4 [shape = 's32[1]{0}', space=sflag, size = 0x4, scoped, tag = 'scoped memory for tpu_custom_call.1']
    #allocation5 [shape = 'u8[262144]{0}', space=vmem, size = 0x40000, scoped, tag = 'input window, operand 1, single buffered']
    #allocation6 [shape = 's32[1]{0}', space=sflag, size = 0x4, scoped, tag = 'scoped memory for tpu_custom_call.1']
    #allocation7 [shape = 'u8[4096]{0}', space=vmem, size = 0x1000, scoped, tag = 'output window, operand 0, single buffered']
    %7 = vsyncpa [#allocation3], 0
    %8 = vsyncpa [#allocation6], 0
    %9 = vsyncpa [#allocation4], 0
    // Predicated region
    $region2: #{tpu_custom_call.1} parent=1 // pred_check
      _
    $region3: #{tpu_custom_call.1} parent=1 // pred_check_branch
      %11 = sbr.rel (0) target = $region5
    $region4: #{tpu_custom_call.1} parent=1 // pred_region
      %s13 = ssub.s32 256, 256
      %14 = vsyncadd [#allocation3], %s13
      %s16 = sshll.u32 [#allocation2], 4
      %s17 = int_to_ptr.vmem [resolvable:$true] %s16
      %19 = dma.hbm_to_vmem [thread:$0]  %s0, 256, %s17, [#allocation3]
    $region5: #{tpu_custom_call.1} parent=1 // pred_fallthru
      _
    // Predicated region
    $region6: #{tpu_custom_call.1} parent=1 // pred_check
      _
    $region7: #{tpu_custom_call.1} parent=1 // pred_check_branch
      %21 = sbr.rel (0) target = $region9
    $region8: #{tpu_custom_call.1} parent=1 // pred_region
      %s23 = ssub.s32 8192, 8192
      %24 = vsyncadd [#allocation6], %s23
      %s25 = sshll.u32 [#allocation5], 4
      %s26 = int_to_ptr.vmem [resolvable:$true] %s25
      %31 = dma.hbm_to_vmem [thread:$0]  %s1, 8192, %s26, [#allocation6], 128, 128, 8
    $region9: #{tpu_custom_call.1} parent=1 // pred_fallthru
      _
    // Predicated region
    $region10: #{tpu_custom_call.1} parent=1 // pred_check
      _
    $region11: #{tpu_custom_call.1} parent=1 // pred_check_branch
      %33 = sbr.rel (0) target = $region13
    $region12: #{tpu_custom_call.1} parent=1 // pred_region
      %34 = dma.done [#allocation3], 256
    $region13: #{tpu_custom_call.1} parent=1 // pred_fallthru
      _
    // Predicated region
    $region14: #{tpu_custom_call.1} parent=1 // pred_check
      _
    $region15: #{tpu_custom_call.1} parent=1 // pred_check_branch
      %36 = sbr.rel (0) target = $region17
    $region16: #{tpu_custom_call.1} parent=1 // pred_region
      %37 = dma.done [#allocation6], 8192
    $region17: #{tpu_custom_call.1} parent=1 // pred_fallthru
      _
    %38 = vst [vmem:[#allocation7] sm:$0x1] 0.0
    %v39 = vld [vmem:[#allocation2] sm:$0x33]
    %v40 = vld [vmem:[#allocation2 + $0x8] sm:$0x33]
    %v41 = vld [vmem:[#allocation5] sm:$0xff]
    %v42 = vld [vmem:[#allocation5 + $0x8] sm:$0xff]
    %v43 = vld [vmem:[#allocation5 + $0x10] sm:$0xff]
    %v44 = vld [vmem:[#allocation5 + $0x18] sm:$0xff]
    %v45 = vld [vmem:[#allocation5 + $0x20] sm:$0xff]
    %v46 = vld [vmem:[#allocation5 + $0x28] sm:$0xff]
    %v47 = vld [vmem:[#allocation5 + $0x30] sm:$0xff]
    %v48 = vld [vmem:[#allocation5 + $0x38] sm:$0xff]
    %v49 = vld [vmem:[#allocation5 + $0x40] sm:$0xff]
    %v50 = vld [vmem:[#allocation5 + $0x48] sm:$0xff]
    %v51 = vld [vmem:[#allocation5 + $0x50] sm:$0xff]
    %v52 = vld [vmem:[#allocation5 + $0x58] sm:$0xff]
    %v53 = vld [vmem:[#allocation5 + $0x60] sm:$0xff]
    %v54 = vld [vmem:[#allocation5 + $0x68] sm:$0xff]
    %v55 = vld [vmem:[#allocation5 + $0x70] sm:$0xff]
    %v56 = vld [vmem:[#allocation5 + $0x78] sm:$0xff]
    %v57 = vld [vmem:[#allocation5 + $0x80] sm:$0xff]
    %v58 = vld [vmem:[#allocation5 + $0x88] sm:$0xff]
    %v59 = vld [vmem:[#allocation5 + $0x90] sm:$0xff]
    %v60 = vld [vmem:[#allocation5 + $0x98] sm:$0xff]
    %v61 = vld [vmem:[#allocation5 + $0xa0] sm:$0xff]
    %v62 = vld [vmem:[#allocation5 + $0xa8] sm:$0xff]
    %v63 = vld [vmem:[#allocation5 + $0xb0] sm:$0xff]
    %v64 = vld [vmem:[#allocation5 + $0xb8] sm:$0xff]
    %v65 = vld [vmem:[#allocation5 + $0xc0] sm:$0xff]
    %v66 = vld [vmem:[#allocation5 + $0xc8] sm:$0xff]
    %v67 = vld [vmem:[#allocation5 + $0xd0] sm:$0xff]
    %v68 = vld [vmem:[#allocation5 + $0xd8] sm:$0xff]
    %v69 = vld [vmem:[#allocation5 + $0xe0] sm:$0xff]
    %v70 = vld [vmem:[#allocation5 + $0xe8] sm:$0xff]
    %v71 = vld [vmem:[#allocation5 + $0xf0] sm:$0xff]
    %v72 = vld [vmem:[#allocation5 + $0xf8] sm:$0xff]
    %v73 = vld [vmem:[#allocation5 + $0x100] sm:$0xff]
    %v74 = vld [vmem:[#allocation5 + $0x108] sm:$0xff]
    %v75 = vld [vmem:[#allocation5 + $0x110] sm:$0xff]
    %v76 = vld [vmem:[#allocation5 + $0x118] sm:$0xff]
    %v77 = vld [vmem:[#allocation5 + $0x120] sm:$0xff]
    %v78 = vld [vmem:[#allocation5 + $0x128] sm:$0xff]
    %v79 = vld [vmem:[#allocation5 + $0x130] sm:$0xff]
    %v80 = vld [vmem:[#allocation5 + $0x138] sm:$0xff]
    %v81 = vld [vmem:[#allocation5 + $0x140] sm:$0xff]
    %v82 = vld [vmem:[#allocation5 + $0x148] sm:$0xff]
    %v83 = vld [vmem:[#allocation5 + $0x150] sm:$0xff]
    %v84 = vld [vmem:[#allocation5 + $0x158] sm:$0xff]
    %v85 = vld [vmem:[#allocation5 + $0x160] sm:$0xff]
    %v86 = vld [vmem:[#allocation5 + $0x168] sm:$0xff]
    %v87 = vld [vmem:[#allocation5 + $0x170] sm:$0xff]
    %v88 = vld [vmem:[#allocation5 + $0x178] sm:$0xff]
    %v89 = vld [vmem:[#allocation5 + $0x180] sm:$0xff]
    %v90 = vld [vmem:[#allocation5 + $0x188] sm:$0xff]
    %v91 = vld [vmem:[#allocation5 + $0x190] sm:$0xff]
    %v92 = vld [vmem:[#allocation5 + $0x198] sm:$0xff]
    %v93 = vld [vmem:[#allocation5 + $0x1a0] sm:$0xff]
    %v94 = vld [vmem:[#allocation5 + $0x1a8] sm:$0xff]
    %v95 = vld [vmem:[#allocation5 + $0x1b0] sm:$0xff]
    %v96 = vld [vmem:[#allocation5 + $0x1b8] sm:$0xff]
    %v97 = vld [vmem:[#allocation5 + $0x1c0] sm:$0xff]
    %v98 = vld [vmem:[#allocation5 + $0x1c8] sm:$0xff]
    %v99 = vld [vmem:[#allocation5 + $0x1d0] sm:$0xff]
    %v100 = vld [vmem:[#allocation5 + $0x1d8] sm:$0xff]
    %v101 = vld [vmem:[#allocation5 + $0x1e0] sm:$0xff]
    %v102 = vld [vmem:[#allocation5 + $0x1e8] sm:$0xff]
    %v103 = vld [vmem:[#allocation5 + $0x1f0] sm:$0xff]
    %v104 = vld [vmem:[#allocation5 + $0x1f8] sm:$0xff]
    %v107 = vcombine.high %v39, %v39
    %v108 = vcombine.high %v40, %v40
    %111 = vmatprep.subr.mxu0 0.0
    %112 = vmatpush1.msra.mxu0 %v41
    %113 = vmatprep.subr.mxu0 0.0
    %114 = vmatpush1.msra.mxu0 %v42
    %115 = vmatprep.subr.mxu0 0.0
    %116 = vmatpush1.msra.mxu0 %v43
    %117 = vmatprep.subr.mxu0 0.0
    %118 = vmatpush1.msra.mxu0 %v44
    %119 = vmatprep.subr.mxu0 0.0
    %120 = vmatpush1.msra.mxu0 %v45
    %121 = vmatprep.subr.mxu0 0.0
    %122 = vmatpush1.msra.mxu0 %v46
    %123 = vmatprep.subr.mxu0 0.0
    %124 = vmatpush1.msra.mxu0 %v47
    %125 = vmatprep.subr.mxu0 0.0
    %126 = vmatpush1.msra.mxu0 %v48
    %127 = vmatprep.subr.mxu0 0.0
    %128 = vmatpush1.msra.mxu0 %v49
    %129 = vmatprep.subr.mxu0 0.0
    %130 = vmatpush1.msra.mxu0 %v50
    %131 = vmatprep.subr.mxu0 0.0
    %132 = vmatpush1.msra.mxu0 %v51
    %133 = vmatprep.subr.mxu0 0.0
    %134 = vmatpush1.msra.mxu0 %v52
    %135 = vmatprep.subr.mxu0 0.0
    %136 = vmatpush1.msra.mxu0 %v53
    %137 = vmatprep.subr.mxu0 0.0
    %138 = vmatpush1.msra.mxu0 %v54
    %139 = vmatprep.subr.mxu0 0.0
    %140 = vmatpush1.msra.mxu0 %v55
    %141 = vmatprep.subr.mxu0 0.0
    %142 = vmatpush1.msra.mxu0 %v56
    %143 = vmatprep.subr.mxu0 0.0
    %144 = vmatpush1.msra.mxu0 %v57
    %145 = vmatprep.subr.mxu0 0.0
    %146 = vmatpush1.msra.mxu0 %v58
    %147 = vmatprep.subr.mxu0 0.0
    %148 = vmatpush1.msra.mxu0 %v59
    %149 = vmatprep.subr.mxu0 0.0
    %150 = vmatpush1.msra.mxu0 %v60
    %151 = vmatprep.subr.mxu0 0.0
    %152 = vmatpush1.msra.mxu0 %v61
    %153 = vmatprep.subr.mxu0 0.0
    %154 = vmatpush1.msra.mxu0 %v62
    %155 = vmatprep.subr.mxu0 0.0
    %156 = vmatpush1.msra.mxu0 %v63
    %157 = vmatprep.subr.mxu0 0.0
    %158 = vmatpush1.msra.mxu0 %v64
    %159 = vmatprep.subr.mxu0 0.0
    %160 = vmatpush1.msra.mxu0 %v65
    %161 = vmatprep.subr.mxu0 0.0
    %162 = vmatpush1.msra.mxu0 %v66
    %163 = vmatprep.subr.mxu0 0.0
    %164 = vmatpush1.msra.mxu0 %v67
    %165 = vmatprep.subr.mxu0 0.0
    %166 = vmatpush1.msra.mxu0 %v68
    %167 = vmatprep.subr.mxu0 0.0
    %168 = vmatpush1.msra.mxu0 %v69
    %169 = vmatprep.subr.mxu0 0.0
    %170 = vmatpush1.msra.mxu0 %v70
    %171 = vmatprep.subr.mxu0 0.0
    %172 = vmatpush1.msra.mxu0 %v71
    %173 = vmatprep.subr.mxu0 0.0
    %174 = vmatpush1.msra.mxu0 %v72
    %175 = vmatprep.mubr.f32.mxu0 %v107
    %176 = vmatmul.mubr.f32.gmra.mrb[0].mxu0 %v39
    %v177 = vpop.f32.mrb[0].mxu0
    %v178 = vadd.f32 0.0, %v177
    %v179 = vpop.f32.mrb[0].mxu0
    %180 = vdwg.mxu0
    %181 = vmatprep.subr.mxu0 0.0
    %182 = vmatpush1.msra.mxu0 %v73
    %183 = vmatprep.subr.mxu0 0.0
    %184 = vmatpush1.msra.mxu0 %v74
    %185 = vmatprep.subr.mxu0 0.0
    %186 = vmatpush1.msra.mxu0 %v75
    %187 = vmatprep.subr.mxu0 0.0
    %188 = vmatpush1.msra.mxu0 %v76
    %189 = vmatprep.subr.mxu0 0.0
    %190 = vmatpush1.msra.mxu0 %v77
    %191 = vmatprep.subr.mxu0 0.0
    %192 = vmatpush1.msra.mxu0 %v78
    %193 = vmatprep.subr.mxu0 0.0
    %194 = vmatpush1.msra.mxu0 %v79
    %195 = vmatprep.subr.mxu0 0.0
    %196 = vmatpush1.msra.mxu0 %v80
    %197 = vmatprep.subr.mxu0 0.0
    %198 = vmatpush1.msra.mxu0 %v81
    %199 = vmatprep.subr.mxu0 0.0
    %200 = vmatpush1.msra.mxu0 %v82
    %201 = vmatprep.subr.mxu0 0.0
    %202 = vmatpush1.msra.mxu0 %v83
    %203 = vmatprep.subr.mxu0 0.0
    %204 = vmatpush1.msra.mxu0 %v84
    %205 = vmatprep.subr.mxu0 0.0
    %206 = vmatpush1.msra.mxu0 %v85
    %207 = vmatprep.subr.mxu0 0.0
    %208 = vmatpush1.msra.mxu0 %v86
    %209 = vmatprep.subr.mxu0 0.0
    %210 = vmatpush1.msra.mxu0 %v87
    %211 = vmatprep.subr.mxu0 0.0
    %212 = vmatpush1.msra.mxu0 %v88
    %213 = vmatprep.subr.mxu0 0.0
    %214 = vmatpush1.msra.mxu0 %v89
    %215 = vmatprep.subr.mxu0 0.0
    %216 = vmatpush1.msra.mxu0 %v90
    %217 = vmatprep.subr.mxu0 0.0
    %218 = vmatpush1.msra.mxu0 %v91
    %219 = vmatprep.subr.mxu0 0.0
    %220 = vmatpush1.msra.mxu0 %v92
    %221 = vmatprep.subr.mxu0 0.0
    %222 = vmatpush1.msra.mxu0 %v93
    %223 = vmatprep.subr.mxu0 0.0
    %224 = vmatpush1.msra.mxu0 %v94
    %225 = vmatprep.subr.mxu0 0.0
    %226 = vmatpush1.msra.mxu0 %v95
    %227 = vmatprep.subr.mxu0 0.0
    %228 = vmatpush1.msra.mxu0 %v96
    %229 = vmatprep.subr.mxu0 0.0
    %230 = vmatpush1.msra.mxu0 %v97
    %231 = vmatprep.subr.mxu0 0.0
    %232 = vmatpush1.msra.mxu0 %v98
    %233 = vmatprep.subr.mxu0 0.0
    %234 = vmatpush1.msra.mxu0 %v99
    %235 = vmatprep.subr.mxu0 0.0
    %236 = vmatpush1.msra.mxu0 %v100
    %237 = vmatprep.subr.mxu0 0.0
    %238 = vmatpush1.msra.mxu0 %v101
    %239 = vmatprep.subr.mxu0 0.0
    %240 = vmatpush1.msra.mxu0 %v102
    %241 = vmatprep.subr.mxu0 0.0
    %242 = vmatpush1.msra.mxu0 %v103
    %243 = vmatprep.subr.mxu0 0.0
    %244 = vmatpush1.msra.mxu0 %v104
    %245 = vmatprep.mubr.f32.mxu0 %v108
    %246 = vmatmul.mubr.f32.gmra.mrb[0].mxu0 %v40
    %v247 = vpop.f32.mrb[0].mxu0
    %v248 = vadd.f32 %v178, %v247
    %v249 = vpop.f32.mrb[0].mxu0
    %250 = vdwg.mxu0
    %251 = vst [vmem:[#allocation7 + $0x1] sm:$0x3] %v248
    %252 = vst [vmem:[#allocation7 + $0x3] sm:$0x3] 0.0
    %v253 = vld [vmem:[#allocation2] sm:$0xcc]
    %v254 = vld [vmem:[#allocation2 + $0x8] sm:$0xcc]
    %v255 = vld [vmem:[#allocation5] sm:$0xff]
    %v256 = vld [vmem:[#allocation5 + $0x8] sm:$0xff]
    %v257 = vld [vmem:[#allocation5 + $0x10] sm:$0xff]
    %v258 = vld [vmem:[#allocation5 + $0x18] sm:$0xff]
    %v259 = vld [vmem:[#allocation5 + $0x20] sm:$0xff]
    %v260 = vld [vmem:[#allocation5 + $0x28] sm:$0xff]
    %v261 = vld [vmem:[#allocation5 + $0x30] sm:$0xff]
    %v262 = vld [vmem:[#allocation5 + $0x38] sm:$0xff]
    %v263 = vld [vmem:[#allocation5 + $0x40] sm:$0xff]
    %v264 = vld [vmem:[#allocation5 + $0x48] sm:$0xff]
    %v265 = vld [vmem:[#allocation5 + $0x50] sm:$0xff]
    %v266 = vld [vmem:[#allocation5 + $0x58] sm:$0xff]
    %v267 = vld [vmem:[#allocation5 + $0x60] sm:$0xff]
    %v268 = vld [vmem:[#allocation5 + $0x68] sm:$0xff]
    %v269 = vld [vmem:[#allocation5 + $0x70] sm:$0xff]
    %v270 = vld [vmem:[#allocation5 + $0x78] sm:$0xff]
    %v271 = vld [vmem:[#allocation5 + $0x80] sm:$0xff]
    %v272 = vld [vmem:[#allocation5 + $0x88] sm:$0xff]
    %v273 = vld [vmem:[#allocation5 + $0x90] sm:$0xff]
    %v274 = vld [vmem:[#allocation5 + $0x98] sm:$0xff]
    %v275 = vld [vmem:[#allocation5 + $0xa0] sm:$0xff]
    %v276 = vld [vmem:[#allocation5 + $0xa8] sm:$0xff]
    %v277 = vld [vmem:[#allocation5 + $0xb0] sm:$0xff]
    %v278 = vld [vmem:[#allocation5 + $0xb8] sm:$0xff]
    %v279 = vld [vmem:[#allocation5 + $0xc0] sm:$0xff]
    %v280 = vld [vmem:[#allocation5 + $0xc8] sm:$0xff]
    %v281 = vld [vmem:[#allocation5 + $0xd0] sm:$0xff]
    %v282 = vld [vmem:[#allocation5 + $0xd8] sm:$0xff]
    %v283 = vld [vmem:[#allocation5 + $0xe0] sm:$0xff]
    %v284 = vld [vmem:[#allocation5 + $0xe8] sm:$0xff]
    %v285 = vld [vmem:[#allocation5 + $0xf0] sm:$0xff]
    %v286 = vld [vmem:[#allocation5 + $0xf8] sm:$0xff]
    %v287 = vld [vmem:[#allocation5 + $0x100] sm:$0xff]
    %v288 = vld [vmem:[#allocation5 + $0x108] sm:$0xff]
    %v289 = vld [vmem:[#allocation5 + $0x110] sm:$0xff]
    %v290 = vld [vmem:[#allocation5 + $0x118] sm:$0xff]
    %v291 = vld [vmem:[#allocation5 + $0x120] sm:$0xff]
    %v292 = vld [vmem:[#allocation5 + $0x128] sm:$0xff]
    %v293 = vld [vmem:[#allocation5 + $0x130] sm:$0xff]
    %v294 = vld [vmem:[#allocation5 + $0x138] sm:$0xff]
    %v295 = vld [vmem:[#allocation5 + $0x140] sm:$0xff]
    %v296 = vld [vmem:[#allocation5 + $0x148] sm:$0xff]
    %v297 = vld [vmem:[#allocation5 + $0x150] sm:$0xff]
    %v298 = vld [vmem:[#allocation5 + $0x158] sm:$0xff]
    %v299 = vld [vmem:[#allocation5 + $0x160] sm:$0xff]
    %v300 = vld [vmem:[#allocation5 + $0x168] sm:$0xff]
    %v301 = vld [vmem:[#allocation5 + $0x170] sm:$0xff]
    %v302 = vld [vmem:[#allocation5 + $0x178] sm:$0xff]
    %v303 = vld [vmem:[#allocation5 + $0x180] sm:$0xff]
    %v304 = vld [vmem:[#allocation5 + $0x188] sm:$0xff]
    %v305 = vld [vmem:[#allocation5 + $0x190] sm:$0xff]
    %v306 = vld [vmem:[#allocation5 + $0x198] sm:$0xff]
    %v307 = vld [vmem:[#allocation5 + $0x1a0] sm:$0xff]
    %v308 = vld [vmem:[#allocation5 + $0x1a8] sm:$0xff]
    %v309 = vld [vmem:[#allocation5 + $0x1b0] sm:$0xff]
    %v310 = vld [vmem:[#allocation5 + $0x1b8] sm:$0xff]
    %v311 = vld [vmem:[#allocation5 + $0x1c0] sm:$0xff]
    %v312 = vld [vmem:[#allocation5 + $0x1c8] sm:$0xff]
    %v313 = vld [vmem:[#allocation5 + $0x1d0] sm:$0xff]
    %v314 = vld [vmem:[#allocation5 + $0x1d8] sm:$0xff]
    %v315 = vld [vmem:[#allocation5 + $0x1e0] sm:$0xff]
    %v316 = vld [vmem:[#allocation5 + $0x1e8] sm:$0xff]
    %v317 = vld [vmem:[#allocation5 + $0x1f0] sm:$0xff]
    %v318 = vld [vmem:[#allocation5 + $0x1f8] sm:$0xff]
    %v321 = vcombine.high %v253, %v253
    %v322 = vcombine.high %v254, %v254
    %v323 = vrot.slane %v253, 2
    %v324 = vrot.slane %v321, 2
    %v325 = vrot.slane %v254, 2
    %v326 = vrot.slane %v322, 2
    %331 = vmatprep.subr.mxu0 0.0
    %332 = vmatpush1.msra.mxu0 %v255
    %333 = vmatprep.subr.mxu0 0.0
    %334 = vmatpush1.msra.mxu0 %v256
    %335 = vmatprep.subr.mxu0 0.0
    %336 = vmatpush1.msra.mxu0 %v257
    %337 = vmatprep.subr.mxu0 0.0
    %338 = vmatpush1.msra.mxu0 %v258
    %339 = vmatprep.subr.mxu0 0.0
    %340 = vmatpush1.msra.mxu0 %v259
    %341 = vmatprep.subr.mxu0 0.0
    %342 = vmatpush1.msra.mxu0 %v260
    %343 = vmatprep.subr.mxu0 0.0
    %344 = vmatpush1.msra.mxu0 %v261
    %345 = vmatprep.subr.mxu0 0.0
    %346 = vmatpush1.msra.mxu0 %v262
    %347 = vmatprep.subr.mxu0 0.0
    %348 = vmatpush1.msra.mxu0 %v263
    %349 = vmatprep.subr.mxu0 0.0
    %350 = vmatpush1.msra.mxu0 %v264
    %351 = vmatprep.subr.mxu0 0.0
    %352 = vmatpush1.msra.mxu0 %v265
    %353 = vmatprep.subr.mxu0 0.0
    %354 = vmatpush1.msra.mxu0 %v266
    %355 = vmatprep.subr.mxu0 0.0
    %356 = vmatpush1.msra.mxu0 %v267
    %357 = vmatprep.subr.mxu0 0.0
    %358 = vmatpush1.msra.mxu0 %v268
    %359 = vmatprep.subr.mxu0 0.0
    %360 = vmatpush1.msra.mxu0 %v269
    %361 = vmatprep.subr.mxu0 0.0
    %362 = vmatpush1.msra.mxu0 %v270
    %363 = vmatprep.subr.mxu0 0.0
    %364 = vmatpush1.msra.mxu0 %v271
    %365 = vmatprep.subr.mxu0 0.0
    %366 = vmatpush1.msra.mxu0 %v272
    %367 = vmatprep.subr.mxu0 0.0
    %368 = vmatpush1.msra.mxu0 %v273
    %369 = vmatprep.subr.mxu0 0.0
    %370 = vmatpush1.msra.mxu0 %v274
    %371 = vmatprep.subr.mxu0 0.0
    %372 = vmatpush1.msra.mxu0 %v275
    %373 = vmatprep.subr.mxu0 0.0
    %374 = vmatpush1.msra.mxu0 %v276
    %375 = vmatprep.subr.mxu0 0.0
    %376 = vmatpush1.msra.mxu0 %v277
    %377 = vmatprep.subr.mxu0 0.0
    %378 = vmatpush1.msra.mxu0 %v278
    %379 = vmatprep.subr.mxu0 0.0
    %380 = vmatpush1.msra.mxu0 %v279
    %381 = vmatprep.subr.mxu0 0.0
    %382 = vmatpush1.msra.mxu0 %v280
    %383 = vmatprep.subr.mxu0 0.0
    %384 = vmatpush1.msra.mxu0 %v281
    %385 = vmatprep.subr.mxu0 0.0
    %386 = vmatpush1.msra.mxu0 %v282
    %387 = vmatprep.subr.mxu0 0.0
    %388 = vmatpush1.msra.mxu0 %v283
    %389 = vmatprep.subr.mxu0 0.0
    %390 = vmatpush1.msra.mxu0 %v284
    %391 = vmatprep.subr.mxu0 0.0
    %392 = vmatpush1.msra.mxu0 %v285
    %393 = vmatprep.subr.mxu0 0.0
    %394 = vmatpush1.msra.mxu0 %v286
    %395 = vmatprep.mubr.f32.mxu0 %v324
    %396 = vmatmul.mubr.f32.gmra.mrb[0].mxu0 %v323
    %v397 = vpop.f32.mrb[0].mxu0
    %v398 = vadd.f32 0.0, %v397
    %v399 = vpop.f32.mrb[0].mxu0
    %400 = vdwg.mxu0
    %401 = vmatprep.subr.mxu0 0.0
    %402 = vmatpush1.msra.mxu0 %v287
    %403 = vmatprep.subr.mxu0 0.0
    %404 = vmatpush1.msra.mxu0 %v288
    %405 = vmatprep.subr.mxu0 0.0
    %406 = vmatpush1.msra.mxu0 %v289
    %407 = vmatprep.subr.mxu0 0.0
    %408 = vmatpush1.msra.mxu0 %v290
    %409 = vmatprep.subr.mxu0 0.0
    %410 = vmatpush1.msra.mxu0 %v291
    %411 = vmatprep.subr.mxu0 0.0
    %412 = vmatpush1.msra.mxu0 %v292
    %413 = vmatprep.subr.mxu0 0.0
    %414 = vmatpush1.msra.mxu0 %v293
    %415 = vmatprep.subr.mxu0 0.0
    %416 = vmatpush1.msra.mxu0 %v294
    %417 = vmatprep.subr.mxu0 0.0
    %418 = vmatpush1.msra.mxu0 %v295
    %419 = vmatprep.subr.mxu0 0.0
    %420 = vmatpush1.msra.mxu0 %v296
    %421 = vmatprep.subr.mxu0 0.0
    %422 = vmatpush1.msra.mxu0 %v297
    %423 = vmatprep.subr.mxu0 0.0
    %424 = vmatpush1.msra.mxu0 %v298
    %425 = vmatprep.subr.mxu0 0.0
    %426 = vmatpush1.msra.mxu0 %v299
    %427 = vmatprep.subr.mxu0 0.0
    %428 = vmatpush1.msra.mxu0 %v300
    %429 = vmatprep.subr.mxu0 0.0
    %430 = vmatpush1.msra.mxu0 %v301
    %431 = vmatprep.subr.mxu0 0.0
    %432 = vmatpush1.msra.mxu0 %v302
    %433 = vmatprep.subr.mxu0 0.0
    %434 = vmatpush1.msra.mxu0 %v303
    %435 = vmatprep.subr.mxu0 0.0
    %436 = vmatpush1.msra.mxu0 %v304
    %437 = vmatprep.subr.mxu0 0.0
    %438 = vmatpush1.msra.mxu0 %v305
    %439 = vmatprep.subr.mxu0 0.0
    %440 = vmatpush1.msra.mxu0 %v306
    %441 = vmatprep.subr.mxu0 0.0
    %442 = vmatpush1.msra.mxu0 %v307
    %443 = vmatprep.subr.mxu0 0.0
    %444 = vmatpush1.msra.mxu0 %v308
    %445 = vmatprep.subr.mxu0 0.0
    %446 = vmatpush1.msra.mxu0 %v309
    %447 = vmatprep.subr.mxu0 0.0
    %448 = vmatpush1.msra.mxu0 %v310
    %449 = vmatprep.subr.mxu0 0.0
    %450 = vmatpush1.msra.mxu0 %v311
    %451 = vmatprep.subr.mxu0 0.0
    %452 = vmatpush1.msra.mxu0 %v312
    %453 = vmatprep.subr.mxu0 0.0
    %454 = vmatpush1.msra.mxu0 %v313
    %455 = vmatprep.subr.mxu0 0.0
    %456 = vmatpush1.msra.mxu0 %v314
    %457 = vmatprep.subr.mxu0 0.0
    %458 = vmatpush1.msra.mxu0 %v315
    %459 = vmatprep.subr.mxu0 0.0
    %460 = vmatpush1.msra.mxu0 %v316
    %461 = vmatprep.subr.mxu0 0.0
    %462 = vmatpush1.msra.mxu0 %v317
    %463 = vmatprep.subr.mxu0 0.0
    %464 = vmatpush1.msra.mxu0 %v318
    %465 = vmatprep.mubr.f32.mxu0 %v326
    %466 = vmatmul.mubr.f32.gmra.mrb[0].mxu0 %v325
    %v467 = vpop.f32.mrb[0].mxu0
    %v468 = vadd.f32 %v398, %v467
    %v469 = vpop.f32.mrb[0].mxu0
    %470 = vdwg.mxu0
    %471 = vst [vmem:[#allocation7 + $0x5] sm:$0x3] %v468
    %472 = vst [vmem:[#allocation7 + $0x7] sm:$0x1] 0.0
    // Predicated region
    $region18: #{tpu_custom_call.1} parent=1 // pred_check
      _
    $region19: #{tpu_custom_call.1} parent=1 // pred_check_branch
      %474 = sbr.rel (0) target = $region21
    $region20: #{tpu_custom_call.1} parent=1 // pred_region
      %s476 = ssub.s32 128, 128
      %477 = vsyncadd [#allocation4], %s476
      %s479 = sshll.u32 [#allocation7], 4
      %s480 = int_to_ptr.vmem [resolvable:$true] %s479
      %482 = dma.vmem_to_hbm [thread:$0]  %s480, 128, %s2, [#allocation4]
    $region21: #{tpu_custom_call.1} parent=1 // pred_fallthru
      _
    // Predicated region
    $region22: #{tpu_custom_call.1} parent=1 // pred_check
      _
    $region23: #{tpu_custom_call.1} parent=1 // pred_check_branch
      %484 = sbr.rel (0) target = $region25
    $region24: #{tpu_custom_call.1} parent=1 // pred_region
      %485 = dma.done [#allocation4], 128
    $region25: #{tpu_custom_call.1} parent=1 // pred_fallthru
      _
    %486 = vsyncpa [#allocation3], 1
    %487 = vsyncpa [#allocation6], 1
    %488 = vsyncpa [#allocation4], 1

</llo_original>
